<compile_context>
chip_gen: v6e
topology: v6e:2x2x1
jax: 0.10.0
libtpu: 0.0.40
codegen_flags: <defaults>
</compile_context>

<pallas_src>
import functools

import jax
import jax.numpy as jnp
import numpy as np
from jax import lax
from jax.experimental import pallas as pl
from jax.experimental.pallas import tpu as pltpu

EPS = 1e-6
LANE = 128
STATIC_T_UNROLL = 64          # unroll the recursion as straight-line code up to this T
MAX_TILE_GROUPS = 32          # 32 lane groups = 4096 batch elements per grid step


def _mlp_params_kernel(num_layers, emb_ref, *refs):
    """Per-skill parameter MLP.  refs = [w0, b0, ..., w{L-1}, b{L-1}, w_out, b_out, out].

    Skills live on the lane axis: h = relu(W @ h + b) with PyTorch (out, in) weights;
    output is clip(sigmoid(W_out @ h + b_out), EPS, 1-EPS) of shape (4, s_tile).
    """
    w_refs = refs[0:2 * num_layers:2]
    b_refs = refs[1:2 * num_layers:2]
    wout_ref = refs[2 * num_layers]
    bout_ref = refs[2 * num_layers + 1]
    params_ref = refs[2 * num_layers + 2]

    h = emb_ref[...]                                        # (H, s_tile) f32
    for i in range(num_layers):
        h = jnp.maximum(
            jnp.dot(w_refs[i][...], h, preferred_element_type=jnp.float32)
            + b_refs[i][...], 0.0)
    logits = (jnp.dot(wout_ref[...], h, preferred_element_type=jnp.float32)
              + bout_ref[...])
    params_ref[...] = jnp.clip(jax.nn.sigmoid(logits), EPS, 1.0 - EPS)


def _bkt_kernel(T, params_ref, y_ref, corrects_ref, latents_ref):
    """Sequential BKT recursion.  Blocks: params (4, g, 128); y / outputs (T, g, 128)."""
    l = params_ref[0]                                       # learn rate  (g, 128)
    gu = params_ref[1]                                      # guess
    s = params_ref[2]                                       # slip
    latent0 = params_ref[3]                                 # initial knowledge p(L0)

    one_m_s = 1.0 - s
    one_m_g = 1.0 - gu

    def bkt_step(latent, y_t):
        # y == -1 padding counts as incorrect: torch.where(y==-1, 0, y) > 0.5 <=> y == 1.
        m = y_t == 1
        lcs = latent * one_m_s
        ls = latent * s
        nl = 1.0 - latent
        correct = lcs + nl * gu
        num = jnp.where(m, lcs, ls)
        den = jnp.where(m, correct, ls + nl * one_m_g)
        # EUP approx reciprocal + 2 Newton steps (~1 ulp): keeps the divide off the
        # VALU slot and shortens the serial chain while staying within 1e-5 of exact.
        r = pl.reciprocal(den, approx=True)
        r = r * (2.0 - den * r)
        r = r * (2.0 - den * r)
        k_t = num * r
        nxt = jnp.clip(k_t + (1.0 - k_t) * l, EPS, 1.0 - EPS)
        return correct, nxt

    if T <= STATIC_T_UNROLL:
        latent = latent0
        for t in range(T):                                  # static indices, full stores
            latents_ref[t] = latent
            correct, latent = bkt_step(latent, y_ref[t])
            corrects_ref[t] = correct
    else:
        def body(t, latent):
            latents_ref[t] = latent
            correct, nxt = bkt_step(latent, y_ref[t])
            corrects_ref[t] = correct
            return nxt
        lax.fori_loop(0, T, body, latent0, unroll=4)


def _skill_params_table(skill_embed, weights, biases, w_out, b_out):
    """Run the parameter MLP once per skill; returns a (4, S_pad) f32 table."""
    S, H = skill_embed.shape
    num_layers = len(weights)
    s_tile = LANE * min(pl.cdiv(S, LANE), 16)
    S_pad = pl.cdiv(S, s_tile) * s_tile

    emb_t = jnp.pad(jnp.transpose(skill_embed.astype(jnp.float32)),
                    ((0, 0), (0, S_pad - S)))               # (H, S_pad)

    const_map = lambda i: (0, 0)                            # VMEM-resident weights
    inputs = [emb_t]
    in_specs = [pl.BlockSpec((H, s_tile), lambda i: (0, i))]
    for w, b in zip(weights, biases):
        inputs += [w.astype(jnp.float32), b.reshape(-1, 1).astype(jnp.float32)]
        in_specs += [pl.BlockSpec(w.shape, const_map),
                     pl.BlockSpec((w.shape[0], 1), const_map)]
    inputs += [w_out.astype(jnp.float32), b_out.reshape(-1, 1).astype(jnp.float32)]
    in_specs += [pl.BlockSpec(w_out.shape, const_map),
                 pl.BlockSpec((w_out.shape[0], 1), const_map)]

    return pl.pallas_call(
        functools.partial(_mlp_params_kernel, num_layers),
        out_shape=jax.ShapeDtypeStruct((4, S_pad), jnp.float32),
        grid_spec=pltpu.PrefetchScalarGridSpec(
            num_scalar_prefetch=0,
            grid=(S_pad // s_tile,),
            in_specs=in_specs,
            out_specs=pl.BlockSpec((4, s_tile), lambda i: (0, i)),
        ),
        compiler_params=pltpu.CompilerParams(dimension_semantics=("parallel",)),
    )(*inputs)


def bktnn_forward(X, y, skill_embed, weights, biases, w_out, b_out, *, b_tile=None):
    """X: (B,) int32 skill ids; y: (B, T) int32 in {-1, 0, 1}.

    weights[i]: (H, H) stored (out, in) like nn.Linear; biases[i]: (H,);
    w_out: (4, H); b_out: (4,).  Returns (corrects, latents), each (B, T) f32.
    """
    B, T = y.shape

    # --- stage 1: per-skill params (O(num_skills) MLP work instead of O(B)) ---
    params_table = _skill_params_table(skill_embed, weights, biases, w_out, b_out)

    # --- batch tiling: lane groups of 128 elements, tiles of g_tile groups ---
    G = pl.cdiv(B, LANE)
    if b_tile is None:
        if G <= 8:
            g_tile = G                                      # single full-extent tile
        else:
            # up to 32 groups (4096 elems) per step; >= 2 tiles -> both TCs on v7x.
            g_tile = min(MAX_TILE_GROUPS, max(8, 8 * (G // 16)))
    else:
        g_tile = max(1, b_tile // LANE)
        if g_tile >= G:
            g_tile = G
        else:
            g_tile = max(8, (g_tile // 8) * 8)              # (8, 128) block constraint
            g_tile = min(g_tile, G)
    G_pad = pl.cdiv(G, g_tile) * g_tile
    B_pad = G_pad * LANE

    # --- JAX glue: per-element param gather, padding, time-major layout ---
    # TODO(synk): fuse the gather via PrefetchScalarGridSpec + pl.Element row maps if
    # num_skills is not << B; drop the output transposes if the consumer accepts (T, B).
    X_pad = jnp.pad(X.astype(jnp.int32), (0, B_pad - B))            # pad with skill 0
    params_b = jnp.take(params_table, X_pad, axis=1)                 # (4, B_pad)
    params_b = params_b.reshape(4, G_pad, LANE)
    y_t = jnp.pad(jnp.transpose(y.astype(jnp.int32)),
                  ((0, 0), (0, B_pad - B)), constant_values=-1)      # (T, B_pad)
    y_t = y_t.reshape(T, G_pad, LANE)

    tile_map = lambda i: (0, i, 0)
    in_specs = [pl.BlockSpec((4, g_tile, LANE), tile_map),
                pl.BlockSpec((T, g_tile, LANE), tile_map)]
    out_specs = [pl.BlockSpec((T, g_tile, LANE), tile_map),
                 pl.BlockSpec((T, g_tile, LANE), tile_map)]
    out_shape = (jax.ShapeDtypeStruct((T, G_pad, LANE), jnp.float32),
                 jax.ShapeDtypeStruct((T, G_pad, LANE), jnp.float32))

    cost = pl.CostEstimate(
        flops=int(B_pad * T * 16),
        transcendentals=int(B_pad * T),
        bytes_accessed=int(B_pad * (16 + 12 * T)),
    )

    corrects_t, latents_t = pl.pallas_call(
        functools.partial(_bkt_kernel, T),
        out_shape=out_shape,
        grid_spec=pltpu.PrefetchScalarGridSpec(
            num_scalar_prefetch=0,
            grid=(G_pad // g_tile,),
            in_specs=in_specs,
            out_specs=out_specs,
        ),
        compiler_params=pltpu.CompilerParams(
            dimension_semantics=("parallel",),   # shards batch tiles across TCs on v7x
        ),
        cost_estimate=cost,
    )(params_b, y_t)

    # Back to the module's (B, T) layout, dropping batch padding.
    corrects = jnp.transpose(corrects_t.reshape(T, B_pad))[:B]
    latents = jnp.transpose(latents_t.reshape(T, B_pad))[:B]
    return corrects, latents


def _reference_forward(X, y, skill_embed, weights, biases, w_out, b_out):
    """Pure-JAX reference mirroring the PyTorch forward (weights stored (out, in))."""
    h = skill_embed[X].astype(jnp.float32)
    for w, b in zip(weights, biases):
        h = jnp.maximum(h @ w.T + b, 0.0)
    params = jnp.clip(jax.nn.sigmoid(h @ w_out.T + b_out), EPS, 1.0 - EPS)
    l, g, s, latent = params[:, 0], params[:, 1], params[:, 2], params[:, 3]
    B, T = y.shape
    corrects, latents = [], []
    for t in range(T):
        latents.append(latent)
        tc = jnp.where(y[:, t] == -1, 0, y[:, t]).astype(jnp.float32)
        correct = latent * (1 - s) + (1 - latent) * g
        k_t1 = latent * (1 - s) / (latent * (1 - s) + (1 - latent) * g)
        k_t0 = latent * s / (latent * s + (1 - latent) * (1 - g))
        k_t = jnp.where(tc > 0.5, k_t1, k_t0)
        latent = jnp.clip(k_t + (1 - k_t) * l, EPS, 1.0 - EPS)
        corrects.append(correct)
    return jnp.stack(corrects, axis=1), jnp.stack(latents, axis=1)


if __name__ == "__main__":
    num_skills, hidden_dim, num_layers = 8, 32, 2
    B, T = 4, 8

    key = jax.random.PRNGKey(0)
    keys = jax.random.split(key, 6 + 2 * num_layers)

    scale = 1.0 / np.sqrt(hidden_dim)
    skill_embed = jax.random.normal(keys[0], (num_skills, hidden_dim), jnp.float32)
    # nn.Linear-style (out, in) weights.
    weights = [
        scale * jax.random.normal(keys[1 + i], (hidden_dim, hidden_dim), jnp.float32)
        for i in range(num_layers)
    ]
    biases = [
        0.1 * jax.random.normal(keys[1 + num_layers + i], (hidden_dim,), jnp.float32)
        for i in range(num_layers)
    ]
    w_out = scale * jax.random.normal(keys[1 + 2 * num_layers], (4, hidden_dim), jnp.float32)
    b_out = 0.1 * jax.random.normal(keys[2 + 2 * num_layers], (4,), jnp.float32)

    X = jax.random.randint(keys[3 + 2 * num_layers], (B,), 0, num_skills, jnp.int32)
    # y in {-1, 0, 1} (-1 = padding, treated as incorrect for the update)
    y = jax.random.randint(jax.random.PRNGKey(42), (B, T), -1, 2, jnp.int32)

    corrects, latents = bktnn_forward(X, y, skill_embed, weights, biases, w_out, b_out)
    jax.block_until_ready((corrects, latents))

    ref_c, ref_l = _reference_forward(X, y, skill_embed, weights, biases, w_out, b_out)
    np.testing.assert_allclose(np.asarray(corrects), np.asarray(ref_c), rtol=1e-5, atol=1e-5)
    np.testing.assert_allclose(np.asarray(latents), np.asarray(ref_l), rtol=1e-5, atol=1e-5)

    # Second check: larger batch exercising multiple grid tiles (grid >= 2) and the
    # automatic tile selection (G = 20 lane groups -> g_tile = 8, grid = 3).
    B2 = 2500
    X2 = jax.random.randint(keys[4 + 2 * num_layers], (B2,), 0, num_skills, jnp.int32)
    y2 = jax.random.randint(jax.random.PRNGKey(7), (B2, T), -1, 2, jnp.int32)
    c2, l2 = bktnn_forward(X2, y2, skill_embed, weights, biases, w_out, b_out)
    jax.block_until_ready((c2, l2))
    rc2, rl2 = _reference_forward(X2, y2, skill_embed, weights, biases, w_out, b_out)
    np.testing.assert_allclose(np.asarray(c2), np.asarray(rc2), rtol=1e-5, atol=1e-5)
    np.testing.assert_allclose(np.asarray(l2), np.asarray(rl2), rtol=1e-5, atol=1e-5)

    print("KERNEL_OK")
</pallas_src>

<mosaic_0001>
module attributes {stable_mosaic.version = 11 : i64} {
  func.func @_mlp_params_kernel(%arg0: i32, %arg1: memref<32x128xf32, #tpu.memory_space<vmem>>, %arg2: memref<32x32xf32, #tpu.memory_space<vmem>>, %arg3: memref<32x1xf32, #tpu.memory_space<vmem>>, %arg4: memref<32x32xf32, #tpu.memory_space<vmem>>, %arg5: memref<32x1xf32, #tpu.memory_space<vmem>>, %arg6: memref<4x32xf32, #tpu.memory_space<vmem>>, %arg7: memref<4x1xf32, #tpu.memory_space<vmem>>, %arg8: memref<4x128xf32, #tpu.memory_space<vmem>>) attributes {dimension_semantics = [#tpu.dimension_semantics<parallel>], iteration_bounds = array<i64: 1>, scalar_prefetch = 0 : i64, scratch_operands = 0 : i64, tpu.core_type = #tpu.core_type<tc>, window_params = [{transform_indices = @transform_0, window_bounds = array<i64: 32, 128>}, {pipeline_mode = #tpu.pipeline_mode<synchronous>, transform_indices = @transform_1, window_bounds = array<i64: 32, 32>}, {pipeline_mode = #tpu.pipeline_mode<synchronous>, transform_indices = @transform_2, window_bounds = array<i64: 32, 1>}, {pipeline_mode = #tpu.pipeline_mode<synchronous>, transform_indices = @transform_3, window_bounds = array<i64: 32, 32>}, {pipeline_mode = #tpu.pipeline_mode<synchronous>, transform_indices = @transform_4, window_bounds = array<i64: 32, 1>}, {pipeline_mode = #tpu.pipeline_mode<synchronous>, transform_indices = @transform_5, window_bounds = array<i64: 4, 32>}, {pipeline_mode = #tpu.pipeline_mode<synchronous>, transform_indices = @transform_6, window_bounds = array<i64: 4, 1>}, {transform_indices = @transform_7, window_bounds = array<i64: 4, 128>}]} {
    %c0 = arith.constant 0 : index
    %c0_0 = arith.constant 0 : index
    %0 = vector.load %arg1[%c0, %c0_0] : memref<32x128xf32, #tpu.memory_space<vmem>>, vector<32x128xf32>
    %c0_1 = arith.constant 0 : index
    %c0_2 = arith.constant 0 : index
    %1 = vector.load %arg2[%c0_1, %c0_2] : memref<32x32xf32, #tpu.memory_space<vmem>>, vector<32x32xf32>
    %cst = arith.constant dense<0.000000e+00> : vector<32x128xf32>
    %2 = tpu.matmul %1, %0, %cst {dimension_numbers = #tpu.dot_dimension_numbers<[1], [0], [0], [1], [0, 0, 1, 1], [], []>} : vector<32x32xf32>, vector<32x128xf32>, vector<32x128xf32> -> vector<32x128xf32>
    %c0_3 = arith.constant 0 : index
    %c0_4 = arith.constant 0 : index
    %3 = vector.load %arg3[%c0_3, %c0_4] : memref<32x1xf32, #tpu.memory_space<vmem>>, vector<32x1xf32>
    %4 = vector.broadcast %3 : vector<32x1xf32> to vector<32x128xf32>
    %5 = arith.addf %2, %4 : vector<32x128xf32>
    %cst_5 = arith.constant 0.000000e+00 : f32
    %6 = vector.broadcast %cst_5 : f32 to vector<32x128xf32>
    %7 = arith.maximumf %5, %6 : vector<32x128xf32>
    %c0_6 = arith.constant 0 : index
    %c0_7 = arith.constant 0 : index
    %8 = vector.load %arg4[%c0_6, %c0_7] : memref<32x32xf32, #tpu.memory_space<vmem>>, vector<32x32xf32>
    %cst_8 = arith.constant dense<0.000000e+00> : vector<32x128xf32>
    %9 = tpu.matmul %8, %7, %cst_8 {dimension_numbers = #tpu.dot_dimension_numbers<[1], [0], [0], [1], [0, 0, 1, 1], [], []>} : vector<32x32xf32>, vector<32x128xf32>, vector<32x128xf32> -> vector<32x128xf32>
    %c0_9 = arith.constant 0 : index
    %c0_10 = arith.constant 0 : index
    %10 = vector.load %arg5[%c0_9, %c0_10] : memref<32x1xf32, #tpu.memory_space<vmem>>, vector<32x1xf32>
    %11 = vector.broadcast %10 : vector<32x1xf32> to vector<32x128xf32>
    %12 = arith.addf %9, %11 : vector<32x128xf32>
    %cst_11 = arith.constant 0.000000e+00 : f32
    %13 = vector.broadcast %cst_11 : f32 to vector<32x128xf32>
    %14 = arith.maximumf %12, %13 : vector<32x128xf32>
    %c0_12 = arith.constant 0 : index
    %c0_13 = arith.constant 0 : index
    %15 = vector.load %arg6[%c0_12, %c0_13] : memref<4x32xf32, #tpu.memory_space<vmem>>, vector<4x32xf32>
    %cst_14 = arith.constant dense<0.000000e+00> : vector<4x128xf32>
    %16 = tpu.matmul %15, %14, %cst_14 {dimension_numbers = #tpu.dot_dimension_numbers<[1], [0], [0], [1], [0, 0, 1, 1], [], []>} : vector<4x32xf32>, vector<32x128xf32>, vector<4x128xf32> -> vector<4x128xf32>
    %c0_15 = arith.constant 0 : index
    %c0_16 = arith.constant 0 : index
    %17 = vector.load %arg7[%c0_15, %c0_16] : memref<4x1xf32, #tpu.memory_space<vmem>>, vector<4x1xf32>
    %18 = vector.broadcast %17 : vector<4x1xf32> to vector<4x128xf32>
    %19 = arith.addf %16, %18 : vector<4x128xf32>
    %20 = arith.negf %19 : vector<4x128xf32>
    %21 = math.exp %20 : vector<4x128xf32>
    %cst_17 = arith.constant 1.000000e+00 : f32
    %22 = vector.broadcast %cst_17 : f32 to vector<4x128xf32>
    %23 = arith.addf %22, %21 : vector<4x128xf32>
    %24 = arith.divf %22, %23 : vector<4x128xf32>
    %cst_18 = arith.constant 9.99999997E-7 : f32
    %cst_19 = arith.constant 0.999998986 : f32
    %25 = vector.broadcast %cst_18 : f32 to vector<4x128xf32>
    %26 = arith.maximumf %25, %24 : vector<4x128xf32>
    %27 = vector.broadcast %cst_19 : f32 to vector<4x128xf32>
    %28 = arith.minimumf %27, %26 : vector<4x128xf32>
    %c0_20 = arith.constant 0 : index
    %c0_21 = arith.constant 0 : index
    %29 = vector.load %arg8[%c0_20, %c0_21] : memref<4x128xf32, #tpu.memory_space<vmem>>, vector<4x128xf32>
    tpu.vector_store %arg8[%c0_20, %c0_21], %28 {strides = array<i32>} : memref<4x128xf32, #tpu.memory_space<vmem>>, vector<4x128xf32>,
    return
  }
  func.func @transform_0(%arg0: i32) -> (i32, i32) {
    %c0_i32 = arith.constant 0 : i32
    %c0_i32_0 = arith.constant 0 : i32
    return %c0_i32, %arg0 : i32, i32
  }
  func.func @transform_1(%arg0: i32) -> (i32, i32) {
    %c0_i32 = arith.constant 0 : i32
    %c0_i32_0 = arith.constant 0 : i32
    %c0_i32_1 = arith.constant 0 : i32
    return %c0_i32, %c0_i32_0 : i32, i32
  }
  func.func @transform_2(%arg0: i32) -> (i32, i32) {
    %c0_i32 = arith.constant 0 : i32
    %c0_i32_0 = arith.constant 0 : i32
    %c0_i32_1 = arith.constant 0 : i32
    return %c0_i32, %c0_i32_0 : i32, i32
  }
  func.func @transform_3(%arg0: i32) -> (i32, i32) {
    %c0_i32 = arith.constant 0 : i32
    %c0_i32_0 = arith.constant 0 : i32
    %c0_i32_1 = arith.constant 0 : i32
    return %c0_i32, %c0_i32_0 : i32, i32
  }
  func.func @transform_4(%arg0: i32) -> (i32, i32) {
    %c0_i32 = arith.constant 0 : i32
    %c0_i32_0 = arith.constant 0 : i32
    %c0_i32_1 = arith.constant 0 : i32
    return %c0_i32, %c0_i32_0 : i32, i32
  }
  func.func @transform_5(%arg0: i32) -> (i32, i32) {
    %c0_i32 = arith.constant 0 : i32
    %c0_i32_0 = arith.constant 0 : i32
    %c0_i32_1 = arith.constant 0 : i32
    return %c0_i32, %c0_i32_0 : i32, i32
  }
  func.func @transform_6(%arg0: i32) -> (i32, i32) {
    %c0_i32 = arith.constant 0 : i32
    %c0_i32_0 = arith.constant 0 : i32
    %c0_i32_1 = arith.constant 0 : i32
    return %c0_i32, %c0_i32_0 : i32, i32
  }
  func.func @transform_7(%arg0: i32) -> (i32, i32) {
    %c0_i32 = arith.constant 0 : i32
    %c0_i32_0 = arith.constant 0 : i32
    return %c0_i32, %arg0 : i32, i32
  }
}

</mosaic_0001>

<llo_original>
// kernel: tpu_custom_call.1
$region0: #{tpu_custom_call.1}
  #allocation0 [shape = 'u32[]', space=smem, size = 0x4, offset = 0x4, fixed_abs, tag = 'smem constant byte address 0x4 - core index']
  #allocation1 [shape = 'u32[144,128]{1,0:T(1,128)}', space=vmem, size = 0x12000, scoped, tag = 'internal scratch']
  %s0 = inlined_call_operand.vmem [shape: f32[32,128], index: 0, kind: input, shape index: {}]
  %s1 = inlined_call_operand.vmem [shape: f32[32,32], index: 1, kind: input, shape index: {}]
  %s2 = inlined_call_operand.vmem [shape: f32[32,1], index: 2, kind: input, shape index: {}]
  %s3 = inlined_call_operand.hbm [shape: f32[32,32], index: 3, kind: input, shape index: {}]
  %s4 = inlined_call_operand.vmem [shape: f32[32,1], index: 4, kind: input, shape index: {}]
  %s5 = inlined_call_operand.vmem [shape: f32[4,32], index: 5, kind: input, shape index: {}]
  %s6 = inlined_call_operand.vmem [shape: f32[4,1], index: 6, kind: input, shape index: {}]
  %s7 = inlined_call_operand.hbm [shape: f32[4,128], index: 7, kind: output, shape index: {}]
  %s8 = sld [smem:[#allocation0]]
  $region42: #{tpu_custom_call.1} parent=0
    _
  %s10 = ssub.s32 1, %s8
  %s11 = scalar_select 0, %s10, %s8
  $region1: #{tpu_custom_call.1} parent=0
    #allocation2 [shape = 'u8[16384]{0}', space=vmem, size = 0x4000, scoped, tag = 'input window, operand 3, single buffered']
    #allocation3 [shape = 's32[1]{0}', space=sflag, size = 0x4, scoped, tag = 'scoped memory for tpu_custom_call.1']
    #allocation4 [shape = 's32[1]{0}', space=sflag, size = 0x4, scoped, tag = 'scoped memory for tpu_custom_call.1']
    #allocation5 [shape = 'u8[2048]{0}', space=vmem, size = 0x800, scoped, tag = 'output window, operand 0, single buffered']
    %12 = vsyncpa [#allocation3], 0
    %13 = vsyncpa [#allocation4], 0
    // Predicated region
    $region2: #{tpu_custom_call.1} parent=1 // pred_check
      _
    $region3: #{tpu_custom_call.1} parent=1 // pred_check_branch
      %15 = sbr.rel (0) target = $region5
    $region4: #{tpu_custom_call.1} parent=1 // pred_region
      _
    $region5: #{tpu_custom_call.1} parent=1 // pred_fallthru
      _
    // Predicated region
    $region6: #{tpu_custom_call.1} parent=1 // pred_check
      _
    $region7: #{tpu_custom_call.1} parent=1 // pred_check_branch
      %17 = sbr.rel (0) target = $region9
    $region8: #{tpu_custom_call.1} parent=1 // pred_region
      _
    $region9: #{tpu_custom_call.1} parent=1 // pred_fallthru
      _
    // Predicated region
    $region10: #{tpu_custom_call.1} parent=1 // pred_check
      _
    $region11: #{tpu_custom_call.1} parent=1 // pred_check_branch
      %19 = sbr.rel (0) target = $region13
    $region12: #{tpu_custom_call.1} parent=1 // pred_region
      _
    $region13: #{tpu_custom_call.1} parent=1 // pred_fallthru
      _
    // Predicated region
    $region14: #{tpu_custom_call.1} parent=1 // pred_check
      _
    $region15: #{tpu_custom_call.1} parent=1 // pred_check_branch
      %21 = sbr.rel (0) target = $region17
    $region16: #{tpu_custom_call.1} parent=1 // pred_region
      %s23 = ssub.s32 512, 512
      %24 = vsyncadd [#allocation3], %s23
      %s25 = sshll.u32 [#allocation2], 4
      %s26 = int_to_ptr.vmem [resolvable:$true] %s25
      %31 = dma.hbm_to_vmem [thread:$0]  %s3, 512, %s26, [#allocation3], 128, 128, 8
    $region17: #{tpu_custom_call.1} parent=1 // pred_fallthru
      _
    // Predicated region
    $region18: #{tpu_custom_call.1} parent=1 // pred_check
      _
    $region19: #{tpu_custom_call.1} parent=1 // pred_check_branch
      %33 = sbr.rel (0) target = $region21
    $region20: #{tpu_custom_call.1} parent=1 // pred_region
      _
    $region21: #{tpu_custom_call.1} parent=1 // pred_fallthru
      _
    // Predicated region
    $region22: #{tpu_custom_call.1} parent=1 // pred_check
      _
    $region23: #{tpu_custom_call.1} parent=1 // pred_check_branch
      %35 = sbr.rel (0) target = $region25
    $region24: #{tpu_custom_call.1} parent=1 // pred_region
      _
    $region25: #{tpu_custom_call.1} parent=1 // pred_fallthru
      _
    // Predicated region
    $region26: #{tpu_custom_call.1} parent=1 // pred_check
      _
    $region27: #{tpu_custom_call.1} parent=1 // pred_check_branch
      %37 = sbr.rel (0) target = $region29
    $region28: #{tpu_custom_call.1} parent=1 // pred_region
      _
    $region29: #{tpu_custom_call.1} parent=1 // pred_fallthru
      _
    // Predicated region
    $region30: #{tpu_custom_call.1} parent=1 // pred_check
      _
    $region31: #{tpu_custom_call.1} parent=1 // pred_check_branch
      %39 = sbr.rel (0) target = $region33
    $region32: #{tpu_custom_call.1} parent=1 // pred_region
      %40 = dma.done [#allocation3], 512
    $region33: #{tpu_custom_call.1} parent=1 // pred_fallthru
      _
    %v41 = vld [vmem:[%s0] sm:$0xff]
    %v42 = vld [vmem:[%s0 + $0x8] sm:$0xff]
    %v43 = vld [vmem:[%s0 + $0x10] sm:$0xff]
    %v44 = vld [vmem:[%s0 + $0x18] sm:$0xff]
    %v45 = vld [vmem:[%s1] sm:$0xff]
    %v46 = vld [vmem:[%s1 + $0x8] sm:$0xff]
    %v47 = vld [vmem:[%s1 + $0x10] sm:$0xff]
    %v48 = vld [vmem:[%s1 + $0x18] sm:$0xff]
    %v49 = vld [vmem:[%s2] sm:$0xff]
    %v50 = vld [vmem:[%s2 + $0x8] sm:$0xff]
    %v51 = vld [vmem:[%s2 + $0x10] sm:$0xff]
    %v52 = vld [vmem:[%s2 + $0x18] sm:$0xff]
    %54 = vset.pattern.permute.xlu0 0
    %55 = vperm.xlu0 %54, %v49
    %v56 = vpop.permute.xlu0 %55
    %59 = vset.pattern.permute.xlu0 0
    %60 = vperm.xlu0 %59, %v50
    %v61 = vpop.permute.xlu0 %60
    %64 = vset.pattern.permute.xlu0 0
    %65 = vperm.xlu0 %64, %v51
    %v66 = vpop.permute.xlu0 %65
    %69 = vset.pattern.permute.xlu0 0
    %70 = vperm.xlu0 %69, %v52
    %v71 = vpop.permute.xlu0 %70
    %vm73 = vcmask 261120
    %v75 = vsel %vm73, %v45, 0
    %v78 = vsel %vm73, %v46, 0
    %v81 = vsel %vm73, %v47, 0
    %v84 = vsel %vm73, %v48, 0
    %86 = vmatprep.subr.mxu0 0.0
    %87 = vmatpush1.msra.mxu0 0.0
    %88 = vmatprep.subr.mxu0 0.0
    %89 = vmatpush1.msra.mxu0 0.0
    %90 = vmatprep.subr.mxu0 0.0
    %91 = vmatpush1.msra.mxu0 0.0
    %92 = vmatprep.subr.mxu0 0.0
    %93 = vmatpush1.msra.mxu0 0.0
    %94 = vmatprep.subr.mxu0 0.0
    %95 = vmatpush1.msra.mxu0 0.0
    %96 = vmatprep.subr.mxu0 0.0
    %97 = vmatpush1.msra.mxu0 0.0
    %98 = vmatprep.subr.mxu0 0.0
    %99 = vmatpush1.msra.mxu0 0.0
    %100 = vmatprep.subr.mxu0 0.0
    %101 = vmatpush1.msra.mxu0 0.0
    %102 = vmatprep.subr.mxu0 0.0
    %103 = vmatpush1.msra.mxu0 0.0
    %104 = vmatprep.subr.mxu0 0.0
    %105 = vmatpush1.msra.mxu0 0.0
    %106 = vmatprep.subr.mxu0 0.0
    %107 = vmatpush1.msra.mxu0 0.0
    %108 = vmatprep.subr.mxu0 0.0
    %109 = vmatpush1.msra.mxu0 0.0
    %110 = vmatprep.subr.mxu0 0.0
    %111 = vmatpush1.msra.mxu0 %v44
    %112 = vmatprep.subr.mxu0 0.0
    %113 = vmatpush1.msra.mxu0 %v43
    %114 = vmatprep.subr.mxu0 0.0
    %115 = vmatpush1.msra.mxu0 %v42
    %116 = vmatprep.subr.mxu0 0.0
    %117 = vmatpush1.msra.mxu0 %v41
    %118 = vmatprep.subr.mxu0 0.0
    %119 = vmatpush2.msra.mxu0 0.0
    %120 = vmatprep.subr.mxu0 0.0
    %121 = vmatpush2.msra.mxu0 0.0
    %122 = vmatprep.subr.mxu0 0.0
    %123 = vmatpush2.msra.mxu0 0.0
    %124 = vmatprep.subr.mxu0 0.0
    %125 = vmatpush2.msra.mxu0 0.0
    %126 = vmatprep.subr.mxu0 0.0
    %127 = vmatpush2.msra.mxu0 0.0
    %128 = vmatprep.subr.mxu0 0.0
    %129 = vmatpush2.msra.mxu0 0.0
    %130 = vmatprep.subr.mxu0 0.0
    %131 = vmatpush2.msra.mxu0 0.0
    %132 = vmatprep.subr.mxu0 0.0
    %133 = vmatpush2.msra.mxu0 0.0
    %134 = vmatprep.subr.mxu0 0.0
    %135 = vmatpush2.msra.mxu0 0.0
    %136 = vmatprep.subr.mxu0 0.0
    %137 = vmatpush2.msra.mxu0 0.0
    %138 = vmatprep.subr.mxu0 0.0
    %139 = vmatpush2.msra.mxu0 0.0
    %140 = vmatprep.subr.mxu0 0.0
    %141 = vmatpush2.msra.mxu0 0.0
    %142 = vmatprep.subr.mxu0 0.0
    %143 = vmatpush2.msra.mxu0 0.0
    %144 = vmatprep.subr.mxu0 0.0
    %145 = vmatpush2.msra.mxu0 0.0
    %146 = vmatprep.subr.mxu0 0.0
    %147 = vmatpush2.msra.mxu0 0.0
    %148 = vmatprep.subr.mxu0 0.0
    %149 = vmatpush2.msra.mxu0 0.0
    %150 = vmatprep.mubr.f32.mxu0 0.0
    %151 = vmatmul.mubr.f32.gmra.mxu0 %v75
    %v152 = vpop.f32.mrf.mxu0
    %v153 = vadd.f32 %v56, %v152
    %v154 = vpop.f32.mrf.mxu0
    %155 = vmatprep.mubr.f32.mxu0 0.0
    %156 = vmatmul.mubr.f32.gmra.mxu0 %v78
    %v157 = vpop.f32.mrf.mxu0
    %v158 = vadd.f32 %v61, %v157
    %v159 = vpop.f32.mrf.mxu0
    %160 = vmatprep.mubr.f32.mxu0 0.0
    %161 = vmatmul.mubr.f32.gmra.mxu0 %v81
    %v162 = vpop.f32.mrf.mxu0
    %v163 = vadd.f32 %v66, %v162
    %v164 = vpop.f32.mrf.mxu0
    %165 = vmatprep.mubr.f32.mxu0 0.0
    %166 = vmatmul.mubr.f32.gmra.mxu0 %v84
    %v167 = vpop.f32.mrf.mxu0
    %v168 = vadd.f32 %v71, %v167
    %v169 = vpop.f32.mrf.mxu0
    %170 = vdwg.mxu0
    %v171 = vmax.f32 %v153, 0.0
    %v172 = vmax.f32 %v158, 0.0
    %v173 = vmax.f32 %v163, 0.0
    %v174 = vmax.f32 %v168, 0.0
    %v175 = vld [vmem:[#allocation2] sm:$0xff]
    %v176 = vld [vmem:[#allocation2 + $0x8] sm:$0xff]
    %v177 = vld [vmem:[#allocation2 + $0x10] sm:$0xff]
    %v178 = vld [vmem:[#allocation2 + $0x18] sm:$0xff]
    %v179 = vld [vmem:[%s4] sm:$0xff]
    %v180 = vld [vmem:[%s4 + $0x8] sm:$0xff]
    %v181 = vld [vmem:[%s4 + $0x10] sm:$0xff]
    %v182 = vld [vmem:[%s4 + $0x18] sm:$0xff]
    %184 = vset.pattern.permute.xlu0 0
    %185 = vperm.xlu0 %184, %v179
    %v186 = vpop.permute.xlu0 %185
    %189 = vset.pattern.permute.xlu0 0
    %190 = vperm.xlu0 %189, %v180
    %v191 = vpop.permute.xlu0 %190
    %194 = vset.pattern.permute.xlu0 0
    %195 = vperm.xlu0 %194, %v181
    %v196 = vpop.permute.xlu0 %195
    %199 = vset.pattern.permute.xlu0 0
    %200 = vperm.xlu0 %199, %v182
    %v201 = vpop.permute.xlu0 %200
    %v204 = vsel %vm73, %v175, 0
    %v207 = vsel %vm73, %v176, 0
    %v210 = vsel %vm73, %v177, 0
    %v213 = vsel %vm73, %v178, 0
    %215 = vmatprep.subr.mxu0 0.0
    %216 = vmatpush1.msra.mxu0 0.0
    %217 = vmatprep.subr.mxu0 0.0
    %218 = vmatpush1.msra.mxu0 0.0
    %219 = vmatprep.subr.mxu0 0.0
    %220 = vmatpush1.msra.mxu0 0.0
    %221 = vmatprep.subr.mxu0 0.0
    %222 = vmatpush1.msra.mxu0 0.0
    %223 = vmatprep.subr.mxu0 0.0
    %224 = vmatpush1.msra.mxu0 0.0
    %225 = vmatprep.subr.mxu0 0.0
    %226 = vmatpush1.msra.mxu0 0.0
    %227 = vmatprep.subr.mxu0 0.0
    %228 = vmatpush1.msra.mxu0 0.0
    %229 = vmatprep.subr.mxu0 0.0
    %230 = vmatpush1.msra.mxu0 0.0
    %231 = vmatprep.subr.mxu0 0.0
    %232 = vmatpush1.msra.mxu0 0.0
    %233 = vmatprep.subr.mxu0 0.0
    %234 = vmatpush1.msra.mxu0 0.0
    %235 = vmatprep.subr.mxu0 0.0
    %236 = vmatpush1.msra.mxu0 0.0
    %237 = vmatprep.subr.mxu0 0.0
    %238 = vmatpush1.msra.mxu0 0.0
    %239 = vmatprep.subr.mxu0 0.0
    %240 = vmatpush1.msra.mxu0 %v174
    %241 = vmatprep.subr.mxu0 0.0
    %242 = vmatpush1.msra.mxu0 %v173
    %243 = vmatprep.subr.mxu0 0.0
    %244 = vmatpush1.msra.mxu0 %v172
    %245 = vmatprep.subr.mxu0 0.0
    %246 = vmatpush1.msra.mxu0 %v171
    %247 = vmatprep.subr.mxu0 0.0
    %248 = vmatpush2.msra.mxu0 0.0
    %249 = vmatprep.subr.mxu0 0.0
    %250 = vmatpush2.msra.mxu0 0.0
    %251 = vmatprep.subr.mxu0 0.0
    %252 = vmatpush2.msra.mxu0 0.0
    %253 = vmatprep.subr.mxu0 0.0
    %254 = vmatpush2.msra.mxu0 0.0
    %255 = vmatprep.subr.mxu0 0.0
    %256 = vmatpush2.msra.mxu0 0.0
    %257 = vmatprep.subr.mxu0 0.0
    %258 = vmatpush2.msra.mxu0 0.0
    %259 = vmatprep.subr.mxu0 0.0
    %260 = vmatpush2.msra.mxu0 0.0
    %261 = vmatprep.subr.mxu0 0.0
    %262 = vmatpush2.msra.mxu0 0.0
    %263 = vmatprep.subr.mxu0 0.0
    %264 = vmatpush2.msra.mxu0 0.0
    %265 = vmatprep.subr.mxu0 0.0
    %266 = vmatpush2.msra.mxu0 0.0
    %267 = vmatprep.subr.mxu0 0.0
    %268 = vmatpush2.msra.mxu0 0.0
    %269 = vmatprep.subr.mxu0 0.0
    %270 = vmatpush2.msra.mxu0 0.0
    %271 = vmatprep.subr.mxu0 0.0
    %272 = vmatpush2.msra.mxu0 0.0
    %273 = vmatprep.subr.mxu0 0.0
    %274 = vmatpush2.msra.mxu0 0.0
    %275 = vmatprep.subr.mxu0 0.0
    %276 = vmatpush2.msra.mxu0 0.0
    %277 = vmatprep.subr.mxu0 0.0
    %278 = vmatpush2.msra.mxu0 0.0
    %279 = vmatprep.mubr.f32.mxu0 0.0
    %280 = vmatmul.mubr.f32.gmra.mxu0 %v204
    %v281 = vpop.f32.mrf.mxu0
    %v282 = vadd.f32 %v186, %v281
    %v283 = vpop.f32.mrf.mxu0
    %284 = vmatprep.mubr.f32.mxu0 0.0
    %285 = vmatmul.mubr.f32.gmra.mxu0 %v207
    %v286 = vpop.f32.mrf.mxu0
    %v287 = vadd.f32 %v191, %v286
    %v288 = vpop.f32.mrf.mxu0
    %289 = vmatprep.mubr.f32.mxu0 0.0
    %290 = vmatmul.mubr.f32.gmra.mxu0 %v210
    %v291 = vpop.f32.mrf.mxu0
    %v292 = vadd.f32 %v196, %v291
    %v293 = vpop.f32.mrf.mxu0
    %294 = vmatprep.mubr.f32.mxu0 0.0
    %295 = vmatmul.mubr.f32.gmra.mxu0 %v213
    %v296 = vpop.f32.mrf.mxu0
    %v297 = vadd.f32 %v201, %v296
    %v298 = vpop.f32.mrf.mxu0
    %299 = vdwg.mxu0
    %v300 = vmax.f32 %v282, 0.0
    %v301 = vmax.f32 %v287, 0.0
    %v302 = vmax.f32 %v292, 0.0
    %v303 = vmax.f32 %v297, 0.0
    %v304 = vld [vmem:[%s5] sm:$0xf]
    %v305 = vld [vmem:[%s6] sm:$0xf]
    %307 = vset.pattern.permute.xlu0 0
    %308 = vperm.xlu0 %307, %v305
    %v309 = vpop.permute.xlu0 %308
    %v312 = vsel %vm73, %v304, 0
    %314 = vmatprep.subr.mxu0 0.0
    %315 = vmatpush1.msra.mxu0 0.0
    %316 = vmatprep.subr.mxu0 0.0
    %317 = vmatpush1.msra.mxu0 0.0
    %318 = vmatprep.subr.mxu0 0.0
    %319 = vmatpush1.msra.mxu0 0.0
    %320 = vmatprep.subr.mxu0 0.0
    %321 = vmatpush1.msra.mxu0 0.0
    %322 = vmatprep.subr.mxu0 0.0
    %323 = vmatpush1.msra.mxu0 0.0
    %324 = vmatprep.subr.mxu0 0.0
    %325 = vmatpush1.msra.mxu0 0.0
    %326 = vmatprep.subr.mxu0 0.0
    %327 = vmatpush1.msra.mxu0 0.0
    %328 = vmatprep.subr.mxu0 0.0
    %329 = vmatpush1.msra.mxu0 0.0
    %330 = vmatprep.subr.mxu0 0.0
    %331 = vmatpush1.msra.mxu0 0.0
    %332 = vmatprep.subr.mxu0 0.0
    %333 = vmatpush1.msra.mxu0 0.0
    %334 = vmatprep.subr.mxu0 0.0
    %335 = vmatpush1.msra.mxu0 0.0
    %336 = vmatprep.subr.mxu0 0.0
    %337 = vmatpush1.msra.mxu0 0.0
    %338 = vmatprep.subr.mxu0 0.0
    %339 = vmatpush1.msra.mxu0 %v303
    %340 = vmatprep.subr.mxu0 0.0
    %341 = vmatpush1.msra.mxu0 %v302
    %342 = vmatprep.subr.mxu0 0.0
    %343 = vmatpush1.msra.mxu0 %v301
    %344 = vmatprep.subr.mxu0 0.0
    %345 = vmatpush1.msra.mxu0 %v300
    %346 = vmatprep.subr.mxu0 0.0
    %347 = vmatpush2.msra.mxu0 0.0
    %348 = vmatprep.subr.mxu0 0.0
    %349 = vmatpush2.msra.mxu0 0.0
    %350 = vmatprep.subr.mxu0 0.0
    %351 = vmatpush2.msra.mxu0 0.0
    %352 = vmatprep.subr.mxu0 0.0
    %353 = vmatpush2.msra.mxu0 0.0
    %354 = vmatprep.subr.mxu0 0.0
    %355 = vmatpush2.msra.mxu0 0.0
    %356 = vmatprep.subr.mxu0 0.0
    %357 = vmatpush2.msra.mxu0 0.0
    %358 = vmatprep.subr.mxu0 0.0
    %359 = vmatpush2.msra.mxu0 0.0
    %360 = vmatprep.subr.mxu0 0.0
    %361 = vmatpush2.msra.mxu0 0.0
    %362 = vmatprep.subr.mxu0 0.0
    %363 = vmatpush2.msra.mxu0 0.0
    %364 = vmatprep.subr.mxu0 0.0
    %365 = vmatpush2.msra.mxu0 0.0
    %366 = vmatprep.subr.mxu0 0.0
    %367 = vmatpush2.msra.mxu0 0.0
    %368 = vmatprep.subr.mxu0 0.0
    %369 = vmatpush2.msra.mxu0 0.0
    %370 = vmatprep.subr.mxu0 0.0
    %371 = vmatpush2.msra.mxu0 0.0
    %372 = vmatprep.subr.mxu0 0.0
    %373 = vmatpush2.msra.mxu0 0.0
    %374 = vmatprep.subr.mxu0 0.0
    %375 = vmatpush2.msra.mxu0 0.0
    %376 = vmatprep.subr.mxu0 0.0
    %377 = vmatpush2.msra.mxu0 0.0
    %378 = vmatprep.mubr.f32.mxu0 0.0
    %379 = vmatmul.mubr.f32.gmra.mxu0 %v312
    %v380 = vpop.f32.mrf.mxu0
    %v381 = vadd.f32 %v309, %v380
    %v382 = vpop.f32.mrf.mxu0
    %383 = vdwg.mxu0
    %v384 = vxor.u32 %v381, 2147483648
    %v385 = vmul.f32 %v384, 1.442695
    %v386 = vpow.pop %v385
    %v387 = vadd.f32 %v386, 1.0
    %v388 = vrcp.pop %v387
    %v389 = vmul.f32 1.0, %v388
    %v390 = vmax.f32 %v389, 1e-06
    %v391 = vmin.f32 %v390, 0.999999
    %392 = vst [vmem:[#allocation5] sm:$0xf] %v391
    // Predicated region
    $region34: #{tpu_custom_call.1} parent=1 // pred_check
      _
    $region35: #{tpu_custom_call.1} parent=1 // pred_check_branch
      %394 = sbr.rel (0) target = $region37
    $region36: #{tpu_custom_call.1} parent=1 // pred_region
      %s396 = ssub.s32 64, 64
      %397 = vsyncadd [#allocation4], %s396
      %s399 = sshll.u32 [#allocation5], 4
      %s400 = int_to_ptr.vmem [resolvable:$true] %s399
      %402 = dma.vmem_to_hbm [thread:$0]  %s400, 64, %s7, [#allocation4]
    $region37: #{tpu_custom_call.1} parent=1 // pred_fallthru
      _
    // Predicated region
    $region38: #{tpu_custom_call.1} parent=1 // pred_check
      _
    $region39: #{tpu_custom_call.1} parent=1 // pred_check_branch
      %404 = sbr.rel (0) target = $region41
    $region40: #{tpu_custom_call.1} parent=1 // pred_region
      %405 = dma.done [#allocation4], 64
    $region41: #{tpu_custom_call.1} parent=1 // pred_fallthru
      _
    %406 = vsyncpa [#allocation3], 1
    %407 = vsyncpa [#allocation4], 1

</llo_original>
